<compile_context>
chip_gen: v5e
topology: v5e:2x2
jax: 0.10.0
libtpu: 0.0.40
codegen_flags: <defaults>
</compile_context>

<pallas_src>
import functools
import math

import jax
import jax.numpy as jnp
from jax.experimental import pallas as pl
from jax.experimental.pallas import tpu as pltpu


def _torgb_tile_kernel(wmod_ref, cb_ref, x_ref, o_ref, *, conv_clamp):
    # wmod_ref : (C_out, C_in)  per-batch style-modulated 1x1 conv weight (x.dtype)
    # cb_ref   : (C_out, 1)     ToRGB bias (f32)
    # x_ref    : (C_in, T)      input feature tile (batch dim squeezed)
    # o_ref    : (C_out, T)     output tile

    # Modulated 1x1 conv over this spatial tile (MXU, f32 accumulation).
    out = jnp.dot(wmod_ref[...], x_ref[...], preferred_element_type=jnp.float32)

    # bias_act: linear activation + bias (+ optional clamp).
    out = out + cb_ref[...]
    if conv_clamp is not None:
        out = jnp.clip(out, -conv_clamp, conv_clamp)

    o_ref[...] = out.astype(o_ref.dtype)


def _vmem_budgets():
    """Per-generation VMEM sizing. Conservative default = v7x (64 MiB/TC)."""
    try:
        cap = int(pltpu.get_tpu_info().vmem_capacity_bytes)
    except Exception:
        cap = 64 * 1024 * 1024
    if cap >= 128 * 1024 * 1024:          # v5e / v6e: 128 MiB physical VMEM
        big_block_budget = 64 * 1024 * 1024
        vmem_limit = 96 * 1024 * 1024
    else:                                  # v7x: 64 MiB per TensorCore
        big_block_budget = 32 * 1024 * 1024
        vmem_limit = 48 * 1024 * 1024
    return big_block_budget, vmem_limit


def _pick_lane_tile(hw_pad, c_in, c_out, bpe, budget_bytes):
    """Largest multiple-of-128 divisor of hw_pad whose double-buffered
    x+out blocks fit within budget_bytes (avoids masked tail stores)."""
    denom = 2 * (c_in + c_out) * bpe
    max_lanes = max(128, budget_bytes // denom)
    units = hw_pad // 128                  # hw_pad is a multiple of 128
    max_units = max(1, min(units, max_lanes // 128))
    best = 1
    for d in range(max_units, 0, -1):
        if units % d == 0:
            best = d
            break
    return best * 128


def torgb_forward(x, w, affine_weight, affine_bias, conv_weight, conv_bias,
                  *, conv_clamp=None):
    """x: [B, C_in, H, W] (NCHW), w: [B, w_dim]. Returns [B, C_out, H, W]."""
    B, C_in, H, W = x.shape
    w_dim = w.shape[1]
    C_out, C_in_w, kh, kw = conv_weight.shape
    assert C_in_w == C_in and kh == 1 and kw == 1, "kernel_size=1 path only"
    HW = H * W

    fc_gain = 1.0 / math.sqrt(w_dim)              # FullyConnectedLayer.weight_gain
    rgb_gain = 1.0 / math.sqrt(C_in * kh * kw)    # ToRGBLayer.weight_gain

    # --- affine + weight modulation hoisted out of the kernel (tiny GEMM +
    #     [B,C_out,C_in] broadcast-multiply done once by XLA, gains folded).
    awT = (affine_weight.astype(jnp.float32) * (fc_gain * rgb_gain)).T       # (w_dim, C_in)
    styles = (jnp.dot(w.astype(jnp.float32), awT)
              + (affine_bias.astype(jnp.float32) * rgb_gain)[None, :])       # (B, C_in)
    cw2 = conv_weight.reshape(C_out, C_in).astype(jnp.float32)
    w_mod = (cw2[None, :, :] * styles[:, None, :]).astype(x.dtype)           # (B, C_out, C_in)
    cb2 = conv_bias.reshape(C_out, 1).astype(jnp.float32)

    # --- flatten spatial, pad lanes up to a multiple of 128 so every tile is
    #     full-extent / lane-dense (padded columns are sliced off afterwards).
    x_flat = x.reshape(B, C_in, HW)
    HW_pad = ((HW + 127) // 128) * 128
    if HW_pad != HW:
        x_flat = jnp.pad(x_flat, ((0, 0), (0, 0), (0, HW_pad - HW)))

    # --- per-generation tile sizing + explicit scoped-VMEM limit.
    big_block_budget, vmem_limit = _vmem_budgets()
    bpe = jnp.dtype(x.dtype).itemsize
    T = _pick_lane_tile(HW_pad, C_in, C_out, bpe, big_block_budget)
    n_t = HW_pad // T

    kernel = functools.partial(_torgb_tile_kernel, conv_clamp=conv_clamp)

    out_flat = pl.pallas_call(
        kernel,
        out_shape=jax.ShapeDtypeStruct((B, C_out, HW_pad), x.dtype),
        grid_spec=pltpu.PrefetchScalarGridSpec(
            num_scalar_prefetch=0,
            grid=(B, n_t),
            in_specs=[
                pl.BlockSpec((pl.Squeezed(), C_out, C_in),
                             lambda b, t: (b, 0, 0)),                     # w_mod[b]
                pl.BlockSpec((C_out, 1), lambda b, t: (0, 0)),            # bias
                pl.BlockSpec((pl.Squeezed(), C_in, T),
                             lambda b, t: (b, 0, t)),                     # x tile
            ],
            out_specs=pl.BlockSpec((pl.Squeezed(), C_out, T),
                                   lambda b, t: (b, 0, t)),
        ),
        compiler_params=pltpu.CompilerParams(
            dimension_semantics=("parallel", "parallel"),
            vmem_limit_bytes=vmem_limit),
        cost_estimate=pl.CostEstimate(
            flops=2 * B * C_out * C_in * HW_pad,
            transcendentals=0,
            bytes_accessed=bpe * B * HW_pad * (C_in + C_out)),
    )(w_mod, cb2, x_flat)

    if HW_pad != HW:
        out_flat = out_flat[:, :, :HW]
    return out_flat.reshape(B, C_out, H, W)


def _reference(x, w, affine_weight, affine_bias, conv_weight, conv_bias,
               conv_clamp=None):
    B, C_in, H, W = x.shape
    w_dim = w.shape[1]
    C_out = conv_weight.shape[0]
    fc_gain = 1.0 / math.sqrt(w_dim)
    rgb_gain = 1.0 / math.sqrt(C_in)
    styles = (w @ (affine_weight * fc_gain).T + affine_bias) * rgb_gain   # (B, C_in)
    wmod = conv_weight.reshape(C_out, C_in)[None] * styles[:, None, :]    # (B, C_out, C_in)
    y = jnp.einsum('boc,bchw->bohw', wmod, x) + conv_bias[None, :, None, None]
    if conv_clamp is not None:
        y = jnp.clip(y, -conv_clamp, conv_clamp)
    return y


if __name__ == "__main__":
    # Small shapes consistent with ToRGBLayer(in_channels=8, out_channels=4, w_dim=16)
    B, C_in, C_out, w_dim, H, W = 2, 8, 4, 16, 16, 16

    key = jax.random.PRNGKey(0)
    k_x, k_w, k_aw, k_cw = jax.random.split(key, 4)

    x = jax.random.normal(k_x, (B, C_in, H, W), dtype=jnp.float32)
    w_latent = jax.random.normal(k_w, (B, w_dim), dtype=jnp.float32)

    # Deterministic parameter init (mirrors torch.randn / bias_init=1 / zeros)
    affine_weight = jax.random.normal(k_aw, (C_in, w_dim), dtype=jnp.float32)
    affine_bias = jnp.ones((C_in,), dtype=jnp.float32)          # bias_init=1
    conv_weight = jax.random.normal(k_cw, (C_out, C_in, 1, 1), dtype=jnp.float32)
    conv_bias = jnp.zeros((C_out,), dtype=jnp.float32)

    out = torgb_forward(x, w_latent, affine_weight, affine_bias,
                        conv_weight, conv_bias, conv_clamp=None)
    out = jax.block_until_ready(out)

    ref = _reference(x, w_latent, affine_weight, affine_bias,
                     conv_weight, conv_bias)
    assert out.shape == (B, C_out, H, W)
    assert jnp.allclose(out, ref, atol=1e-4, rtol=1e-4)

    print("KERNEL_OK")
</pallas_src>

<mosaic_0001>
module attributes {stable_mosaic.version = 11 : i64} {
  func.func @_torgb_tile_kernel(%arg0: i32, %arg1: i32, %arg2: memref<1x4x8xf32, #tpu.memory_space<vmem>>, %arg3: memref<4x1xf32, #tpu.memory_space<vmem>>, %arg4: memref<1x8x256xf32, #tpu.memory_space<vmem>>, %arg5: memref<1x4x256xf32, #tpu.memory_space<vmem>>) attributes {dimension_semantics = [#tpu.dimension_semantics<parallel>, #tpu.dimension_semantics<parallel>], iteration_bounds = array<i64: 2, 1>, scalar_prefetch = 0 : i64, scratch_operands = 0 : i64, tpu.core_type = #tpu.core_type<tc>, window_params = [{transform_indices = @transform_0, window_bounds = array<i64: 1, 4, 8>}, {pipeline_mode = #tpu.pipeline_mode<synchronous>, transform_indices = @transform_1, window_bounds = array<i64: 4, 1>}, {transform_indices = @transform_2, window_bounds = array<i64: 1, 8, 256>}, {transform_indices = @transform_3, window_bounds = array<i64: 1, 4, 256>}]} {
    %c0 = arith.constant 0 : index
    %c0_0 = arith.constant 0 : index
    %c0_1 = arith.constant 0 : index
    %0 = vector.load %arg2[%c0, %c0_0, %c0_1] : memref<1x4x8xf32, #tpu.memory_space<vmem>>, vector<1x4x8xf32>
    %1 = vector.shape_cast %0 : vector<1x4x8xf32> to vector<4x8xf32>
    %c0_2 = arith.constant 0 : index
    %c0_3 = arith.constant 0 : index
    %c0_4 = arith.constant 0 : index
    %2 = vector.load %arg4[%c0_2, %c0_3, %c0_4] : memref<1x8x256xf32, #tpu.memory_space<vmem>>, vector<1x8x256xf32>
    %3 = vector.shape_cast %2 : vector<1x8x256xf32> to vector<8x256xf32>
    %cst = arith.constant dense<0.000000e+00> : vector<4x256xf32>
    %4 = tpu.matmul %1, %3, %cst {dimension_numbers = #tpu.dot_dimension_numbers<[1], [0], [0], [1], [0, 0, 1, 1], [], []>} : vector<4x8xf32>, vector<8x256xf32>, vector<4x256xf32> -> vector<4x256xf32>
    %c0_5 = arith.constant 0 : index
    %c0_6 = arith.constant 0 : index
    %5 = vector.load %arg3[%c0_5, %c0_6] : memref<4x1xf32, #tpu.memory_space<vmem>>, vector<4x1xf32>
    %6 = vector.broadcast %5 : vector<4x1xf32> to vector<4x256xf32>
    %7 = arith.addf %4, %6 : vector<4x256xf32>
    %c0_7 = arith.constant 0 : index
    %c0_8 = arith.constant 0 : index
    %c0_9 = arith.constant 0 : index
    %8 = vector.load %arg5[%c0_7, %c0_8, %c0_9] : memref<1x4x256xf32, #tpu.memory_space<vmem>>, vector<1x4x256xf32>
    %9 = vector.shape_cast %8 : vector<1x4x256xf32> to vector<4x256xf32>
    %10 = vector.shape_cast %7 : vector<4x256xf32> to vector<1x4x256xf32>
    tpu.vector_store %arg5[%c0_7, %c0_8, %c0_9], %10 {strides = array<i32>} : memref<1x4x256xf32, #tpu.memory_space<vmem>>, vector<1x4x256xf32>,
    return
  }
  func.func @transform_0(%arg0: i32, %arg1: i32) -> (i32, i32, i32) {
    %c0_i32 = arith.constant 0 : i32
    %c0_i32_0 = arith.constant 0 : i32
    %c0_i32_1 = arith.constant 0 : i32
    return %arg0, %c0_i32, %c0_i32_0 : i32, i32, i32
  }
  func.func @transform_1(%arg0: i32, %arg1: i32) -> (i32, i32) {
    %c0_i32 = arith.constant 0 : i32
    %c0_i32_0 = arith.constant 0 : i32
    %c0_i32_1 = arith.constant 0 : i32
    return %c0_i32, %c0_i32_0 : i32, i32
  }
  func.func @transform_2(%arg0: i32, %arg1: i32) -> (i32, i32, i32) {
    %c0_i32 = arith.constant 0 : i32
    %c0_i32_0 = arith.constant 0 : i32
    return %arg0, %c0_i32, %arg1 : i32, i32, i32
  }
  func.func @transform_3(%arg0: i32, %arg1: i32) -> (i32, i32, i32) {
    %c0_i32 = arith.constant 0 : i32
    %c0_i32_0 = arith.constant 0 : i32
    return %arg0, %c0_i32, %arg1 : i32, i32, i32
  }
}

</mosaic_0001>

<llo_original>
// kernel: tpu_custom_call.1
$region0: #{tpu_custom_call.1}
  #allocation0 [shape = 'u32[]', space=smem, size = 0x4, offset = 0x4, fixed_abs, tag = 'smem constant byte address 0x4 - core index']
  #allocation1 [shape = 'u32[72,128]{1,0:T(1,128)}', space=vmem, size = 0x9000, scoped, tag = 'internal scratch']
  %s0 = inlined_call_operand.hbm [shape: f32[2,4,8], index: 0, kind: input, shape index: {}]
  %s1 = inlined_call_operand.vmem [shape: f32[4,1], index: 1, kind: input, shape index: {}]
  %s2 = inlined_call_operand.hbm [shape: f32[2,8,256], index: 2, kind: input, shape index: {}]
  %s3 = inlined_call_operand.hbm [shape: f32[2,4,256], index: 3, kind: output, shape index: {}]
  %s4 = sld [smem:[#allocation0]]
  $region53: #{tpu_custom_call.1} parent=0
    _
  %s6 = ssub.s32 1, %s4
  %s7 = scalar_select 0, %s6, %s4
  $region1: #{tpu_custom_call.1} parent=0
    #allocation2 [shape = 'u8[4096]{0}', space=vmem, size = 0x1000, scoped, tag = 'input window, operand 0']
    #allocation3 [shape = 's32[2]{0}', space=sflag, size = 0x8, scoped, tag = 'scoped memory for tpu_custom_call.1']
    #allocation4 [shape = 's32[2]{0}', space=sflag, size = 0x8, scoped, tag = 'scoped memory for tpu_custom_call.1']
    #allocation5 [shape = 'u8[16384]{0}', space=vmem, size = 0x4000, scoped, tag = 'input window, operand 2']
    #allocation6 [shape = 's32[2]{0}', space=sflag, size = 0x8, scoped, tag = 'scoped memory for tpu_custom_call.1']
    #allocation7 [shape = 'u8[8192]{0}', space=vmem, size = 0x2000, scoped, tag = 'output window, operand 0']
    %8 = vsyncpa [#allocation3], 0
    %s9 = scalar_lea.sflag [#allocation3], 1
    %10 = vsyncpa %s9, 0
    %11 = vsyncpa [#allocation6], 0
    %s12 = scalar_lea.sflag [#allocation6], 1
    %13 = vsyncpa %s12, 0
    %14 = vsyncpa [#allocation4], 0
    %s15 = scalar_lea.sflag [#allocation4], 1
    %16 = vsyncpa %s15, 0
    loop: start=0, step=1, limit=4
    $region2: #{tpu_custom_call.1} parent=1 // loop_pre_header
      _
    $region3: #{tpu_custom_call.1} parent=1 // loop_header
      %s18 = sphi 0, %s22
      %p19 = scmp.ge.s32.totalorder %s18, 4
      %s25 = sphi 0, %s37
      %s26 = sphi 0, %s33
      %s27 = sphi 0, %s25
      %s28 = sphi 0, %s26
      %s29 = sphi 0, %s27
      %s30 = sphi 0, %s28
      %s40 = sphi 0, %s42
      %s43 = sphi 0, %s40
      %s44 = sphi 0, %s43
      %s60 = sphi 0, %s44
      %s64 = sphi 0, %s64
      %s66 = sphi 0, %s64
      %s67 = sphi 0, %s66
      %s81 = sphi 0, %s67
      %s89 = sphi 0, %s91
      %s92 = sphi 0, %s89
      %s93 = sphi 0, %s92
      %s109 = sphi 0, %s93
      %s117 = sphi 0, %s119
      %s120 = sphi 0, %s117
      %s121 = sphi 0, %s120
      %s137 = sphi 0, %s121
    $region4: #{tpu_custom_call.1} parent=1 // loop_header_branch
      %21 = sbr.rel (%p19) target = $region8
    $region5: #{tpu_custom_call.1} parent=1 // loop_body
      %s23 = ssub.s32 %s18, 1
      %s24 = ssub.s32 %s18, 2
      %s31 = sadd.s32 1, %s26
      %p32 = scmp.ge.s32.totalorder %s31, 1
      %s33 = scalar_select %p32, 0, %s31
      %s34 = sadd.s32 1, %s25
      %s35 = scalar_select %p32, %s34, %s25
      %p36 = scmp.ge.s32.totalorder %s35, 2
      %s37 = scalar_select %p36, 0, %s35
      %s38 = ssub.s32 %s25, %s37
      %p39 = scmp.eq.s32.totalorder %s38, 0
      %s41 = sadd.s32 %s40, 1
      %s42 = scalar_select %p39, %s40, %s41
      %p45 = pneg %p39
      %p46 = scmp.eq.s32.totalorder %s18, 1
      %p47 = por %p45, %p46
      %p48 = scmp.ne.s32.totalorder %s40, %s43
      %p49 = scmp.eq.s32.totalorder %s18, 0
      %p50 = por %p48, %p49
      %p51 = scmp.ne.s32.totalorder %s40, %s43
      %p52 = scmp.eq.s32.totalorder %s23, 1
      %p53 = por %p51, %p52
      %p54 = scmp.ne.s32.totalorder %s43, %s44
      %p55 = scmp.eq.s32.totalorder %s23, 0
      %p56 = por %p54, %p55
      %p57 = scmp.ne.s32.totalorder %s43, %s44
      %p58 = scmp.eq.s32.totalorder %s24, 1
      %p59 = por %p57, %p58
      %p61 = scmp.ne.s32.totalorder %s44, %s60
      %p62 = scmp.eq.s32.totalorder %s24, 0
      %p63 = por %p61, %p62
      %s65 = sadd.s32 %s64, 1
      %p68 = scmp.eq.s32.totalorder %s18, 1
      %p69 = scmp.ne.s32.totalorder %s64, %s66
      %p70 = scmp.eq.s32.totalorder %s18, 0
      %p71 = por %p69, %p70
      %p72 = scmp.ne.s32.totalorder %s64, %s66
      %p73 = scmp.eq.s32.totalorder %s23, 1
      %p74 = por %p72, %p73
      %p75 = scmp.ne.s32.totalorder %s66, %s67
      %p76 = scmp.eq.s32.totalorder %s23, 0
      %p77 = por %p75, %p76
      %p78 = scmp.ne.s32.totalorder %s66, %s67
      %p79 = scmp.eq.s32.totalorder %s24, 1
      %p80 = por %p78, %p79
      %p82 = scmp.ne.s32.totalorder %s67, %s81
      %p83 = scmp.eq.s32.totalorder %s24, 0
      %p84 = por %p82, %p83
      %s85 = ssub.s32 %s25, %s37
      %s86 = ssub.s32 %s26, %s33
      %s87 = sor.u32 %s85, %s86
      %p88 = scmp.eq.s32.totalorder %s87, 0
      %s90 = sadd.s32 %s89, 1
      %s91 = scalar_select %p88, %s89, %s90
      %p94 = pneg %p88
      %p95 = scmp.eq.s32.totalorder %s18, 1
      %p96 = por %p94, %p95
      %p97 = scmp.ne.s32.totalorder %s89, %s92
      %p98 = scmp.eq.s32.totalorder %s18, 0
      %p99 = por %p97, %p98
      %p100 = scmp.ne.s32.totalorder %s89, %s92
      %p101 = scmp.eq.s32.totalorder %s23, 1
      %p102 = por %p100, %p101
      %p103 = scmp.ne.s32.totalorder %s92, %s93
      %p104 = scmp.eq.s32.totalorder %s23, 0
      %p105 = por %p103, %p104
      %p106 = scmp.ne.s32.totalorder %s92, %s93
      %p107 = scmp.eq.s32.totalorder %s24, 1
      %p108 = por %p106, %p107
      %p110 = scmp.ne.s32.totalorder %s93, %s109
      %p111 = scmp.eq.s32.totalorder %s24, 0
      %p112 = por %p110, %p111
      %s113 = ssub.s32 %s25, %s37
      %s114 = ssub.s32 %s26, %s33
      %s115 = sor.u32 %s113, %s114
      %p116 = scmp.eq.s32.totalorder %s115, 0
      %s118 = sadd.s32 %s117, 1
      %s119 = scalar_select %p116, %s117, %s118
      %p122 = pneg %p116
      %p123 = scmp.eq.s32.totalorder %s18, 1
      %p124 = por %p122, %p123
      %p125 = scmp.ne.s32.totalorder %s117, %s120
      %p126 = scmp.eq.s32.totalorder %s18, 0
      %p127 = por %p125, %p126
      %p128 = scmp.ne.s32.totalorder %s117, %s120
      %p129 = scmp.eq.s32.totalorder %s23, 1
      %p130 = por %p128, %p129
      %p131 = scmp.ne.s32.totalorder %s120, %s121
      %p132 = scmp.eq.s32.totalorder %s23, 0
      %p133 = por %p131, %p132
      %p134 = scmp.ne.s32.totalorder %s120, %s121
      %p135 = scmp.eq.s32.totalorder %s24, 1
      %p136 = por %p134, %p135
      %p138 = scmp.ne.s32.totalorder %s121, %s137
      %p139 = scmp.eq.s32.totalorder %s24, 0
      %p140 = por %p138, %p139
      %p141 = scmp.le.s32.totalorder 1, %s18
      %p142 = scmp.lt.s32.totalorder %s18, 3
      %p143 = pnand %p141, %p142
      %p144 = pneg %p143
      // Predicated region
      $region9: #{tpu_custom_call.1} parent=5 // pred_check
        _
      $region10: #{tpu_custom_call.1} parent=5 // pred_check_branch
        %146 = sbr.rel (%p143) target = $region12
      $region11: #{tpu_custom_call.1} parent=5 // pred_region
        %s147 = ssub.s32 %s18, 1
        // Predicated region
        $region13: #{tpu_custom_call.1} parent=11 // pred_check
          %p148 = pneg %p77
        $region14: #{tpu_custom_call.1} parent=11 // pred_check_branch
          %150 = sbr.rel (%p148) target = $region16
        $region15: #{tpu_custom_call.1} parent=11 // pred_region
          _
        $region16: #{tpu_custom_call.1} parent=11 // pred_fallthru
          _
      $region12: #{tpu_custom_call.1} parent=5 // pred_fallthru
        _
      %p151 = scmp.lt.s32.totalorder %s18, 2
      // Predicated region
      $region17: #{tpu_custom_call.1} parent=5 // pred_check
        %p152 = pneg %p151
      $region18: #{tpu_custom_call.1} parent=5 // pred_check_branch
        %154 = sbr.rel (%p152) target = $region20
      $region19: #{tpu_custom_call.1} parent=5 // pred_region
        // Predicated region
        $region21: #{tpu_custom_call.1} parent=19 // pred_check
          %p155 = pneg %p50
        $region22: #{tpu_custom_call.1} parent=19 // pred_check_branch
          %157 = sbr.rel (%p155) target = $region24
        $region23: #{tpu_custom_call.1} parent=19 // pred_region
          %s158 = sand.u32 %s40, 1
          %s159 = scalar_lea.sflag [#allocation3], %s158
          %s160 = sand.u32 %s40, 1
          %s161 = smul.addr %s160, 4
          %s162 = scalar_lea.vmem [#allocation2], %s161
          %164 = vsyncadd %s159, 0
          %s165 = smul.addr %s25, 4
          %s166 = scalar_lea.hbm %s0, %s165
          %s168 = sshll.u32 %s166, 4
          %s169 = int_to_ptr.hbm [resolvable:$true] %s168
          %s170 = sshll.u32 %s162, 4
          %s171 = int_to_ptr.vmem [resolvable:$true] %s170
          %173 = dma.hbm_to_vmem [thread:$0]  %s169, 64, %s171, %s159
        $region24: #{tpu_custom_call.1} parent=19 // pred_fallthru
          _
        // Predicated region
        $region25: #{tpu_custom_call.1} parent=19 // pred_check
          %p174 = pneg %p99
        $region26: #{tpu_custom_call.1} parent=19 // pred_check_branch
          %176 = sbr.rel (%p174) target = $region28
        $region27: #{tpu_custom_call.1} parent=19 // pred_region
          %s177 = sand.u32 %s89, 1
          %s178 = scalar_lea.sflag [#allocation6], %s177
          %s179 = sand.u32 %s89, 1
          %s180 = smul.addr %s179, 16
          %s181 = scalar_lea.vmem [#allocation5], %s180
          %s182 = smul.u32 2, %s26
          %184 = vsyncadd %s178, 0
          %s185 = smul.addr %s25, 2
          %s186 = sadd.s32 %s182, %s185
          %s187 = smul.addr %s186, 8
          %s188 = scalar_lea.hbm %s2, %s187
          %s190 = sshll.u32 %s188, 4
          %s191 = int_to_ptr.hbm [resolvable:$true] %s190
          %s192 = sshll.u32 %s181, 4
          %s193 = int_to_ptr.vmem [resolvable:$true] %s192
          %195 = dma.hbm_to_vmem [thread:$0]  %s191, 256, %s193, %s178
        $region28: #{tpu_custom_call.1} parent=19 // pred_fallthru
          _
      $region20: #{tpu_custom_call.1} parent=5 // pred_fallthru
        _
      %p196 = scmp.le.s32.totalorder 1, %s18
      %p197 = scmp.lt.s32.totalorder %s18, 3
      %p198 = pnand %p196, %p197
      %p199 = pneg %p198
      // Predicated region
      $region29: #{tpu_custom_call.1} parent=5 // pred_check
        _
      $region30: #{tpu_custom_call.1} parent=5 // pred_check_branch
        %201 = sbr.rel (%p198) target = $region32
      $region31: #{tpu_custom_call.1} parent=5 // pred_region
        %s202 = ssub.s32 %s18, 1
        %s203 = sand.u32 %s43, 1
        %s204 = scalar_lea.sflag [#allocation3], %s203
        %s205 = sand.u32 %s43, 1
        %s206 = smul.addr %s205, 4
        %s207 = scalar_lea.vmem [#allocation2], %s206
        // Predicated region
        $region33: #{tpu_custom_call.1} parent=31 // pred_check
          %p208 = pneg %p56
        $region34: #{tpu_custom_call.1} parent=31 // pred_check_branch
          %210 = sbr.rel (%p208) target = $region36
        $region35: #{tpu_custom_call.1} parent=31 // pred_region
          %212 = dma.done %s204, 64
        $region36: #{tpu_custom_call.1} parent=31 // pred_fallthru
          _
        %s213 = sand.u32 %s92, 1
        %s214 = scalar_lea.sflag [#allocation6], %s213
        %s215 = sand.u32 %s92, 1
        %s216 = smul.addr %s215, 16
        %s217 = scalar_lea.vmem [#allocation5], %s216
        // Predicated region
        $region37: #{tpu_custom_call.1} parent=31 // pred_check
          %p218 = pneg %p105
        $region38: #{tpu_custom_call.1} parent=31 // pred_check_branch
          %220 = sbr.rel (%p218) target = $region40
        $region39: #{tpu_custom_call.1} parent=31 // pred_region
          %222 = dma.done %s214, 256
        $region40: #{tpu_custom_call.1} parent=31 // pred_fallthru
          _
        %s223 = sand.u32 %s43, 1
        %s224 = scalar_lea.sflag [#allocation3], %s223
        %s225 = sand.u32 %s43, 1
        %s226 = smul.addr %s225, 4
        %s227 = scalar_lea.vmem [#allocation2], %s226
        %p228 = pneg %p56
        %p229 = pneg %p53
        %p230 = pneg %p77
        %p231 = pneg %p74
        %s232 = sand.u32 %s92, 1
        %s233 = scalar_lea.sflag [#allocation6], %s232
        %s234 = sand.u32 %s92, 1
        %s235 = smul.addr %s234, 16
        %s236 = scalar_lea.vmem [#allocation5], %s235
        %p237 = pneg %p105
        %p238 = pneg %p102
        %p239 = pneg %p133
        %p240 = pneg %p130
        %s241 = sand.u32 %s120, 1
        %s242 = scalar_lea.sflag [#allocation4], %s241
        %s243 = sand.u32 %s120, 1
        %s244 = smul.addr %s243, 8
        %s245 = scalar_lea.vmem [#allocation7], %s244
        %s246 = smul.u32 2, %s28
        %s247 = smul.u32 2, %s28
        %v248 = vld [vmem:[%s207] sm:$0xf]
        %v249 = vld [vmem:[%s217] sm:$0xff]
        %v250 = vld [vmem:[%s217 + $0x8] sm:$0xff]
        %v251 = vld [vmem:[%s1] sm:$0xf]
        %253 = vset.pattern.permute.xlu0 0
        %254 = vperm.xlu0 %253, %v251
        %v255 = vpop.permute.xlu0 %254
        %vm257 = vcmask 64512
        %v259 = vsel %vm257, %v248, 0
        %261 = vmatpush.msra.mxu0 0.0
        %262 = vmatpush.msra.mxu0 0.0
        %263 = vmatpush.msra.mxu0 0.0
        %264 = vmatpush.msra.mxu0 0.0
        %265 = vmatpush.msra.mxu0 0.0
        %266 = vmatpush.msra.mxu0 0.0
        %267 = vmatpush.msra.mxu0 0.0
        %268 = vmatpush.msra.mxu0 0.0
        %269 = vmatpush.msra.mxu0 0.0
        %270 = vmatpush.msra.mxu0 0.0
        %271 = vmatpush.msra.mxu0 0.0
        %272 = vmatpush.msra.mxu0 0.0
        %273 = vmatpush.msra.mxu0 0.0
        %274 = vmatpush.msra.mxu0 0.0
        %275 = vmatpush.msra.mxu0 0.0
        %276 = vmatpush.msra.mxu0 %v249
        %277 = vmatmul.f32.gmra.mxu0 %v259
        %v278 = vpop.f32.mrf.mxu0
        %v279 = vadd.f32 %v255, %v278
        %280 = vdwg.mxu0
        %281 = vmatpush.msra.mxu0 0.0
        %282 = vmatpush.msra.mxu0 0.0
        %283 = vmatpush.msra.mxu0 0.0
        %284 = vmatpush.msra.mxu0 0.0
        %285 = vmatpush.msra.mxu0 0.0
        %286 = vmatpush.msra.mxu0 0.0
        %287 = vmatpush.msra.mxu0 0.0
        %288 = vmatpush.msra.mxu0 0.0
        %289 = vmatpush.msra.mxu0 0.0
        %290 = vmatpush.msra.mxu0 0.0
        %291 = vmatpush.msra.mxu0 0.0
        %292 = vmatpush.msra.mxu0 0.0
        %293 = vmatpush.msra.mxu0 0.0
        %294 = vmatpush.msra.mxu0 0.0
        %295 = vmatpush.msra.mxu0 0.0
        %296 = vmatpush.msra.mxu0 %v250
        %297 = vmatmul.f32.gmra.mxu0 %v259
        %v298 = vpop.f32.mrf.mxu0
        %v299 = vadd.f32 %v255, %v298
        %300 = vdwg.mxu0
        %v303 = vrot.slane %v299, 4
        %vm304 = vcmask 1043456
        %v305 = vsel %vm304, %v279, %v303
        %307 = vst [vmem:[%s245] sm:$0xff] %v305
        %s308 = sand.u32 %s120, 1
        %s309 = scalar_lea.sflag [#allocation4], %s308
        %s310 = sand.u32 %s120, 1
        %s311 = smul.addr %s310, 8
        %s312 = scalar_lea.vmem [#allocation7], %s311
        // Predicated region
        $region41: #{tpu_custom_call.1} parent=31 // pred_check
          %p313 = pneg %p130
        $region42: #{tpu_custom_call.1} parent=31 // pred_check_branch
          %315 = sbr.rel (%p313) target = $region44
        $region43: #{tpu_custom_call.1} parent=31 // pred_region
          %s316 = smul.u32 2, %s28
          %318 = vsyncadd %s309, 0
          %s319 = smul.addr %s27, 2
          %s320 = sadd.s32 %s316, %s319
          %s321 = smul.addr %s320, 4
          %s322 = scalar_lea.hbm %s3, %s321
          %s324 = sshll.u32 %s312, 4
          %s325 = int_to_ptr.vmem [resolvable:$true] %s324
          %s326 = sshll.u32 %s322, 4
          %s327 = int_to_ptr.hbm [resolvable:$true] %s326
          %329 = dma.vmem_to_hbm [thread:$0]  %s325, 128, %s327, %s309
        $region44: #{tpu_custom_call.1} parent=31 // pred_fallthru
          _
      $region32: #{tpu_custom_call.1} parent=5 // pred_fallthru
        _
      %p330 = scmp.le.s32.totalorder 2, %s18
      // Predicated region
      $region45: #{tpu_custom_call.1} parent=5 // pred_check
        %p331 = pneg %p330
      $region46: #{tpu_custom_call.1} parent=5 // pred_check_branch
        %333 = sbr.rel (%p331) target = $region48
      $region47: #{tpu_custom_call.1} parent=5 // pred_region
        %s334 = ssub.s32 %s18, 2
        // Predicated region
        $region49: #{tpu_custom_call.1} parent=47 // pred_check
          %p335 = pneg %p136
        $region50: #{tpu_custom_call.1} parent=47 // pred_check_branch
          %337 = sbr.rel (%p335) target = $region52
        $region51: #{tpu_custom_call.1} parent=47 // pred_region
          %s338 = sand.u32 %s121, 1
          %s339 = scalar_lea.sflag [#allocation4], %s338
          %s340 = sand.u32 %s121, 1
          %s341 = smul.addr %s340, 8
          %s342 = scalar_lea.vmem [#allocation7], %s341
          %344 = dma.done %s339, 128
        $region52: #{tpu_custom_call.1} parent=47 // pred_fallthru
          _
      $region48: #{tpu_custom_call.1} parent=5 // pred_fallthru
        _
    $region6: #{tpu_custom_call.1} parent=1 // loop_footer
      %s22 = sadd.s32 1, %s18
    $region7: #{tpu_custom_call.1} parent=1 // loop_footer_branch
      %17 = sbr.rel target = $region3
    $region8: #{tpu_custom_call.1} parent=1 // loop_exit
      _
    %345 = vsyncpa [#allocation3], 1
    %s346 = scalar_lea.sflag [#allocation3], 1
    %347 = vsyncpa %s346, 1
    %348 = vsyncpa [#allocation6], 1
    %s349 = scalar_lea.sflag [#allocation6], 1
    %350 = vsyncpa %s349, 1
    %351 = vsyncpa [#allocation4], 1
    %s352 = scalar_lea.sflag [#allocation4], 1
    %353 = vsyncpa %s352, 1

</llo_original>
